<compile_context>
chip_gen: v7x
topology: tpu7x:2x2x1
jax: 0.10.0
libtpu: 0.0.40
codegen_flags: <defaults>
</compile_context>

<pallas_src>
import functools
import math

import jax
import jax.numpy as jnp
from jax.experimental import pallas as pl
from jax.experimental.pallas import tpu as pltpu


def _mll_kernel(ipt_ref, tgt_ref, out_ref, *, blk_num, ragged):
    """One row-tile: partial sum of (log_norm - marginalized_gold) over its rows."""
    tm = ipt_ref.shape[0]

    x = ipt_ref[...].astype(jnp.float32)            # (tm, C) scores
    g = tgt_ref[...].astype(jnp.float32)            # (tm, C) {0,1} gold mask

    # Single stable exp pass feeds both logsumexps; the shared row max cancels in
    # log_norm - marginalized_gold.
    m = jnp.max(x, axis=1, keepdims=True)           # (tm, 1)
    p = jnp.exp(x - m)                               # one EUP pass
    denom = jnp.sum(p, axis=1, keepdims=True)        # full row
    num = jnp.sum(p * g, axis=1, keepdims=True)      # gold entries (FMA, no select)

    # row_loss = logsumexp(row) - logsumexp(gold entries); one log per row.
    # (rows without gold: num == 0 -> +inf, matching the torch semantics)
    row_loss = jnp.log(denom / num)                  # (tm, 1)

    if ragged:
        # Last row-block extends past the array; OOB rows hold unspecified data,
        # so zero their contribution using program_id-derived row indices.
        i = pl.program_id(0)
        rows = i * tm + jax.lax.broadcasted_iota(jnp.int32, (tm, 1), 0)
        row_loss = jnp.where(rows < blk_num, row_loss, 0.0)

    out_ref[...] = jnp.sum(row_loss, keepdims=True)  # (1, 1) partial for this tile


def marginal_log_likelihood(prediction, target, reduction='mean', *, _tm_override=None):
    """Pallas equivalent of the PyTorch module's forward pass.

    prediction: (N,) float scores, N = blk_num**2 (any float dtype; upcast in-kernel)
    target:     (N,) {0,1} labels (any dtype; converted to an int8 gold mask)
    returns:    (1,) float32 loss
    """
    n = prediction.shape[0]
    blk_num = int(math.isqrt(n))
    assert blk_num * blk_num == n, "input length must be a perfect square"

    ipt = prediction.reshape(blk_num, blk_num)                       # native dtype
    tgt = (target.reshape(blk_num, blk_num) != 0).astype(jnp.int8)   # 1 B/elem mask
    pred_bytes = jnp.dtype(ipt.dtype).itemsize

    # ---- generation-aware VMEM budget (counts in-kernel f32 temporaries too) ----
    try:
        phys_vmem = int(pltpu.get_tpu_info().vmem_capacity_bytes)    # 64/128 MiB
    except Exception:
        phys_vmem = 64 << 20                                         # v7x-safe fallback
    vmem_limit = int(min(phys_vmem // 2, 48 << 20))                  # scoped limit we request
    work_budget = (vmem_limit * 3) // 4                              # leave headroom

    # Per row: 2x pipeline-buffered (pred + int8 mask) inputs + ~3 f32 temporaries
    # (x.astype(f32), p = exp(...), p*mask) that materialize at tile width.
    per_row = blk_num * (2 * (pred_bytes + 1) + 3 * 4) + 64
    tm_cap = max(32, (work_budget // per_row) // 32 * 32)            # 32: int8 sublane pack

    if _tm_override is not None:
        tm = int(_tm_override)
    elif blk_num <= tm_cap:
        tm = blk_num            # single row-block; block dims == array dims (no constraints)
    else:
        tm = tm_cap             # multiple of 32; ragged last block masked in-kernel
    grid = -(-blk_num // tm)
    ragged = (grid * tm != blk_num)

    kernel = functools.partial(_mll_kernel, blk_num=blk_num, ragged=ragged)

    cost = pl.CostEstimate(
        flops=5 * blk_num * blk_num,
        transcendentals=blk_num * blk_num + blk_num,
        bytes_accessed=blk_num * blk_num * (pred_bytes + 1) + grid * 4,
    )

    # TODO(synk): for tiny blk_num the remaining cost is pure launch overhead —
    # batch many samples into one pallas_call (leading batch grid axis) if the
    # calling code has multiple samples per step.
    partials = pl.pallas_call(
        kernel,
        out_shape=jax.ShapeDtypeStruct((grid, 1), jnp.float32),
        grid=(grid,),
        in_specs=[
            pl.BlockSpec((tm, blk_num), lambda i: (i, 0)),   # scores tile (full width)
            pl.BlockSpec((tm, blk_num), lambda i: (i, 0)),   # int8 gold-mask tile
        ],
        out_specs=pl.BlockSpec((1, 1), lambda i: (i, 0)),    # per-tile partial sum
        compiler_params=pltpu.CompilerParams(
            dimension_semantics=("parallel",),               # independent tiles -> megacore
            vmem_limit_bytes=vmem_limit,
        ),
        cost_estimate=cost,
    )(ipt, tgt)

    loss = jnp.sum(partials)                                 # tiny final reduce in XLA
    if reduction == 'mean':
        loss = loss / jnp.float32(blk_num)
    return loss.reshape(1)


def _reference(prediction, target, reduction='mean'):
    """Pure-JAX reference mirroring the PyTorch code (for verification)."""
    n = prediction.shape[0]
    blk_num = int(math.isqrt(n))
    ipt = prediction.reshape(blk_num, blk_num).astype(jnp.float32)
    tgt = target.reshape(blk_num, blk_num).astype(jnp.float32)
    gold = ipt + jnp.log(tgt)
    marg = jax.scipy.special.logsumexp(gold, axis=1)
    log_norm = jax.scipy.special.logsumexp(ipt, axis=1)
    loss = jnp.sum(log_norm - marg)
    if reduction == 'mean':
        loss = loss / blk_num
    return loss.reshape(1)


def _make_inputs(key, blk_num):
    k_pred, k_tgt = jax.random.split(key)
    n = blk_num * blk_num
    prediction = jax.random.normal(k_pred, (n,), dtype=jnp.float32)
    # Binary targets; ensure at least one positive per row (the "gold" antecedent)
    # so the marginal log-likelihood is finite, as in real coref positive samples.
    tgt_mat = (jax.random.uniform(k_tgt, (blk_num, blk_num)) < 0.3).astype(jnp.float32)
    tgt_mat = jnp.maximum(tgt_mat, jnp.eye(blk_num, dtype=jnp.float32))
    return prediction, tgt_mat.reshape(n)


if __name__ == "__main__":
    key = jax.random.PRNGKey(0)
    k0, k1 = jax.random.split(key)

    # Case 1: small whole-array tile (blk_num = 8, N = 64).
    pred0, tgt0 = _make_inputs(k0, 8)
    loss0 = jax.block_until_ready(marginal_log_likelihood(pred0, tgt0, reduction='mean'))
    ref0 = _reference(pred0, tgt0, reduction='mean')
    assert loss0.shape == (1,)
    assert jnp.allclose(loss0, ref0, atol=1e-5, rtol=1e-5), (loss0, ref0)

    # Case 2: exercises the multi-tile / ragged-last-block path (blk_num = 40, tm = 32).
    pred1, tgt1 = _make_inputs(k1, 40)
    loss1 = jax.block_until_ready(
        marginal_log_likelihood(pred1, tgt1, reduction='mean', _tm_override=32))
    ref1 = _reference(pred1, tgt1, reduction='mean')
    assert loss1.shape == (1,)
    assert jnp.allclose(loss1, ref1, atol=1e-5, rtol=1e-5), (loss1, ref1)

    print("KERNEL_OK")
</pallas_src>

<mosaic_0001>
module attributes {stable_mosaic.version = 11 : i64} {
  func.func @_mll_kernel(%arg0: i32, %arg1: memref<8x8xf32, #tpu.memory_space<vmem>>, %arg2: memref<8x8xi8, #tpu.memory_space<vmem>>, %arg3: memref<1x1xf32, #tpu.memory_space<vmem>>) attributes {dimension_semantics = [#tpu.dimension_semantics<parallel>], iteration_bounds = array<i64: 1>, scalar_prefetch = 0 : i64, scratch_operands = 0 : i64, tpu.core_type = #tpu.core_type<tc>, window_params = [{transform_indices = @transform_0, window_bounds = array<i64: 8, 8>}, {transform_indices = @transform_1, window_bounds = array<i64: 8, 8>}, {transform_indices = @transform_2, window_bounds = array<i64: 1, 1>}]} {
    %c0 = arith.constant 0 : index
    %c0_0 = arith.constant 0 : index
    %0 = vector.load %arg1[%c0, %c0_0] : memref<8x8xf32, #tpu.memory_space<vmem>>, vector<8x8xf32>
    %c0_1 = arith.constant 0 : index
    %c0_2 = arith.constant 0 : index
    %1 = vector.load %arg2[%c0_1, %c0_2] : memref<8x8xi8, #tpu.memory_space<vmem>>, vector<8x8xi8>
    %2 = arith.sitofp %1 : vector<8x8xi8> to vector<8x8xf32>
    %cst = arith.constant dense<0xFF800000> : vector<8xf32>
    %3 = vector.multi_reduction <maximumf>, %0, %cst [1] : vector<8x8xf32> to vector<8xf32>
    %4 = vector.shape_cast %3 : vector<8xf32> to vector<8x1xf32>
    %5 = vector.broadcast %4 : vector<8x1xf32> to vector<8x8xf32>
    %6 = arith.subf %0, %5 : vector<8x8xf32>
    %7 = math.exp %6 : vector<8x8xf32>
    %cst_3 = arith.constant dense<0.000000e+00> : vector<8xf32>
    %8 = vector.multi_reduction <add>, %7, %cst_3 [1] : vector<8x8xf32> to vector<8xf32>
    %9 = vector.shape_cast %8 : vector<8xf32> to vector<8x1xf32>
    %10 = arith.mulf %7, %2 : vector<8x8xf32>
    %cst_4 = arith.constant dense<0.000000e+00> : vector<8xf32>
    %11 = vector.multi_reduction <add>, %10, %cst_4 [1] : vector<8x8xf32> to vector<8xf32>
    %12 = vector.shape_cast %11 : vector<8xf32> to vector<8x1xf32>
    %13 = arith.divf %9, %12 : vector<8x1xf32>
    %14 = math.log %13 : vector<8x1xf32>
    %15 = vector.shape_cast %14 : vector<8x1xf32> to vector<1x8x1xf32>
    %cst_5 = arith.constant dense<0.000000e+00> : vector<1xf32>
    %16 = vector.multi_reduction <add>, %15, %cst_5 [1, 2] : vector<1x8x1xf32> to vector<1xf32>
    %17 = vector.shape_cast %16 : vector<1xf32> to vector<1x1x1xf32>
    %18 = vector.extract %17[0, 0, 0] : f32 from vector<1x1x1xf32>
    %19 = vector.broadcast %18 : f32 to vector<1x1xf32>
    %c0_6 = arith.constant 0 : index
    %c0_7 = arith.constant 0 : index
    %20 = vector.load %arg3[%c0_6, %c0_7] : memref<1x1xf32, #tpu.memory_space<vmem>>, vector<1x1xf32>
    tpu.vector_store %arg3[%c0_6, %c0_7], %19 {strides = array<i32>} : memref<1x1xf32, #tpu.memory_space<vmem>>, vector<1x1xf32>,
    return
  }
  func.func @transform_0(%arg0: i32) -> (i32, i32) {
    %c0_i32 = arith.constant 0 : i32
    %c0_i32_0 = arith.constant 0 : i32
    return %arg0, %c0_i32 : i32, i32
  }
  func.func @transform_1(%arg0: i32) -> (i32, i32) {
    %c0_i32 = arith.constant 0 : i32
    %c0_i32_0 = arith.constant 0 : i32
    return %arg0, %c0_i32 : i32, i32
  }
  func.func @transform_2(%arg0: i32) -> (i32, i32) {
    %c0_i32 = arith.constant 0 : i32
    %c0_i32_0 = arith.constant 0 : i32
    return %arg0, %c0_i32 : i32, i32
  }
}

</mosaic_0001>

<llo_original>
// kernel: tpu_custom_call.1
$region0: #{tpu_custom_call.1}
  #allocation0 [shape = 'u32[]', space=smem, size = 0x4, offset = 0x4, fixed_abs, tag = 'smem constant byte address 0x4 - core index']
  #allocation1 [shape = 'u32[144,128]{1,0:T(1,128)}', space=vmem, size = 0x12000, scoped, tag = 'internal scratch']
  %s0 = inlined_call_operand.hbm [shape: f32[8,8], index: 0, kind: input, shape index: {}]
  %s1 = inlined_call_operand.vmem [shape: s8[8,8], index: 1, kind: input, shape index: {}]
  %s2 = inlined_call_operand.hbm [shape: f32[1,1], index: 2, kind: output, shape index: {}]
  %s3 = sld [smem:[#allocation0]]
  $region22: #{tpu_custom_call.1} parent=0
    _
  %s5 = ssub.s32 1, %s3
  %s6 = scalar_select 0, %s5, %s3
  $region1: #{tpu_custom_call.1} parent=0
    #allocation2 [shape = 'u8[4096]{0}', space=vmem, size = 0x1000, scoped, tag = 'input window, operand 0, single buffered']
    #allocation3 [shape = 's32[1]{0}', space=sflag, size = 0x4, scoped, tag = 'scoped memory for tpu_custom_call.1']
    #allocation4 [shape = 's32[1]{0}', space=sflag, size = 0x4, scoped, tag = 'scoped memory for tpu_custom_call.1']
    #allocation5 [shape = 'u8[512]{0}', space=vmem, size = 0x400, scoped, tag = 'output window, operand 0, single buffered']
    %7 = vsyncpa [#allocation3], 0
    %8 = vsyncpa [#allocation4], 0
    // Predicated region
    $region2: #{tpu_custom_call.1} parent=1 // pred_check
      _
    $region3: #{tpu_custom_call.1} parent=1 // pred_check_branch
      %10 = sbr.rel (0) target = $region5
    $region4: #{tpu_custom_call.1} parent=1 // pred_region
      %s12 = ssub.s32 128, 128
      %13 = vsyncadd [#allocation3], %s12
      %s15 = sshll.u32 [#allocation2], 4
      %s16 = int_to_ptr.vmem [resolvable:$true] %s15
      %18 = dma.hbm_to_vmem [thread:$0]  %s0, 128, %s16, [#allocation3]
    $region5: #{tpu_custom_call.1} parent=1 // pred_fallthru
      _
    // Predicated region
    $region6: #{tpu_custom_call.1} parent=1 // pred_check
      _
    $region7: #{tpu_custom_call.1} parent=1 // pred_check_branch
      %20 = sbr.rel (0) target = $region9
    $region8: #{tpu_custom_call.1} parent=1 // pred_region
      _
    $region9: #{tpu_custom_call.1} parent=1 // pred_fallthru
      _
    // Predicated region
    $region10: #{tpu_custom_call.1} parent=1 // pred_check
      _
    $region11: #{tpu_custom_call.1} parent=1 // pred_check_branch
      %22 = sbr.rel (0) target = $region13
    $region12: #{tpu_custom_call.1} parent=1 // pred_region
      %23 = dma.done [#allocation3], 128
    $region13: #{tpu_custom_call.1} parent=1 // pred_fallthru
      _
    %v24 = vld [vmem:[#allocation2] sm:$0xff]
    %v25 = vld [vmem:[%s1] sm:$0x3]
    %v26 = vunpack.c.0.s8 %v25
    %v27 = vcvt.s32.f32 %v26
    %vm28 = vcmask 64512
    %v29 = vsel %vm28, %v24, -inf
    %30 = vmax.xlane.f32.xlu0 %v29
    %v31 = vpop.xlane.xlu0 %30
    %v32 = vsub.f32 %v24, %v31
    %v33 = vmul.f32 %v32, 1.442695
    %v34 = vpow.pop %v33
    %v35 = vsel %vm28, %v34, 0.0
    %36 = vadd.xlane.f32.xlu0 %v35
    %v37 = vpop.xlane.xlu0 %36
    %v38 = vmul.f32 %v34, %v27
    %v39 = vsel %vm28, %v38, 0.0
    %40 = vadd.xlane.f32.xlu0 %v39
    %v41 = vpop.xlane.xlu0 %40
    %v42 = vrcp.pop %v41
    %v43 = vmul.f32 %v37, %v42
    %v44 = vlog2.pop %v43
    %v45 = vmul.f32 %v44, 0.6931472
    %vm46 = vcmask 7168
    %v47 = vsel %vm46, %v45, 0.0
    %48 = vadd.xlane.f32.xlu0 %v47
    %v49 = vpop.xlane.xlu0 %48
    %v50 = vrot.slane %v49, 4
    %v51 = vadd.f32 %v49, %v50
    %v52 = vrot.slane %v51, 2
    %v53 = vadd.f32 %v51, %v52
    %v54 = vrot.slane %v53, 1
    %v55 = vadd.f32 %v53, %v54
    %s56 = vtos %v55
    %v57 = vstv %s56
    %vm58 = vcmask 0
    %59 = vst.msk [vmem:[#allocation5] sm:$0x1] %vm58, %v57
    // Predicated region
    $region14: #{tpu_custom_call.1} parent=1 // pred_check
      _
    $region15: #{tpu_custom_call.1} parent=1 // pred_check_branch
      %61 = sbr.rel (0) target = $region17
    $region16: #{tpu_custom_call.1} parent=1 // pred_region
      %s63 = ssub.s32 16, 16
      %64 = vsyncadd [#allocation4], %s63
      %s66 = sshll.u32 [#allocation5], 4
      %s67 = int_to_ptr.vmem [resolvable:$true] %s66
      %69 = dma.vmem_to_hbm [thread:$0]  %s67, 16, %s2, [#allocation4]
    $region17: #{tpu_custom_call.1} parent=1 // pred_fallthru
      _
    // Predicated region
    $region18: #{tpu_custom_call.1} parent=1 // pred_check
      _
    $region19: #{tpu_custom_call.1} parent=1 // pred_check_branch
      %71 = sbr.rel (0) target = $region21
    $region20: #{tpu_custom_call.1} parent=1 // pred_region
      %72 = dma.done [#allocation4], 16
    $region21: #{tpu_custom_call.1} parent=1 // pred_fallthru
      _
    %73 = vsyncpa [#allocation3], 1
    %74 = vsyncpa [#allocation4], 1

</llo_original>
